<compile_context>
chip_gen: v5e
topology: v5e:2x2
jax: 0.10.0
libtpu: 0.0.40
codegen_flags: <defaults>
</compile_context>

<pallas_src>
import functools

import jax
import jax.numpy as jnp
from jax.experimental import pallas as pl
from jax.experimental.pallas import tpu as pltpu

_MIB = 1024 * 1024


def _round_up(x, m):
    return ((x + m - 1) // m) * m


def _vmem_budget_bytes():
    """Conservative per-kernel VMEM budget derived from physical capacity."""
    try:
        cap = pltpu.get_tpu_info().vmem_capacity_bytes
    except Exception:  # interpret mode / very old runtimes
        cap = 64 * _MIB  # v7x-safe conservative default
    return int(cap * 0.70)  # headroom for compiler scratch / semaphores


def _pick_tm(M, fits):
    """Row-tile size: biggest tile whose padding waste is small; never slivers."""
    m_al = _round_up(max(M, 1), 8)
    cands = {t for t in (1024, 512, 256, 128, 64, 32, 16, 8) if t <= m_al}
    if m_al <= 1024:
        cands.add(m_al)  # single whole-M row tile when M is modest
    fitting = [t for t in sorted(cands, reverse=True) if fits(t)]
    if not fitting:
        return None
    # Prefer the largest tile with <=12.5% padded rows; otherwise the tile
    # with the least padding (tie-break: larger tile).
    good = [t for t in fitting
            if (_round_up(M, t) - M) / _round_up(M, t) <= 0.125]
    if good:
        return good[0]
    return max(fitting, key=lambda t: (M / _round_up(M, t), t))


# --------------------------------------------------------------------------
# Kernels
# --------------------------------------------------------------------------
def _mm_cat_wide_kernel(x1_ref, x2_ref, o_ref, *, n, lane_aligned):
    # P = x1 @ x2 computed exactly once per row tile (f32 MXU accumulation),
    # cast once, then replicated into the four concatenated column copies.
    p = jnp.dot(
        x1_ref[...], x2_ref[...], preferred_element_type=jnp.float32
    ).astype(o_ref.dtype)
    if lane_aligned:
        # N % 128 == 0 -> each slice store is lane-aligned and unmasked.
        for copy in range(4):
            o_ref[:, pl.ds(copy * n, n)] = p
    else:
        # Unaligned N: build the whole (tm, 4N) slab in-register and issue a
        # single full-block store (lane shuffles ride the otherwise-idle XLU).
        o_ref[...] = jnp.concatenate([p, p, p, p], axis=1)


def _mm_cat_copy_axis_kernel(x1_ref, x2_ref, o_ref, p_ref):
    # Trailing 'copy' grid axis (sequential / 'arbitrary'): compute + cast P
    # once at c == 0, then re-store the cached VMEM tile for c = 1..3.
    @pl.when(pl.program_id(2) == 0)
    def _():
        p_ref[...] = jnp.dot(
            x1_ref[...], x2_ref[...], preferred_element_type=jnp.float32
        ).astype(p_ref.dtype)

    o_ref[...] = p_ref[...]  # full-tile, unmasked, lane-dense store


# --------------------------------------------------------------------------
# Wrapper
# --------------------------------------------------------------------------
def mm_cat(x1, x2, *, force_path=None):
    """out = concat([x1 @ x2] * 4, axis=1)  (== cat([P, cat([P, P], 1), P], 1))."""
    M, K = x1.shape
    K2, N = x2.shape
    assert K == K2, "inner dims of mm must agree"
    out_dtype = jnp.result_type(x1.dtype, x2.dtype)
    ds1 = jnp.dtype(x1.dtype).itemsize
    ds2 = jnp.dtype(x2.dtype).itemsize
    dso = jnp.dtype(out_dtype).itemsize

    budget = _vmem_budget_bytes()
    lane_aligned = (N % 128 == 0)

    # -------- wide-output path: grid = (M/tm,), out block = (tm, 4N) ---------
    def wide_footprint(tm):
        return (2 * tm * K * ds1            # x1 block  (double-buffered)
                + 2 * K * N * ds2           # x2 block  (double-buffered, whole)
                + 2 * tm * 4 * N * dso)     # out block (double-buffered)

    tm_wide = None
    if force_path != "copy":
        tm_wide = _pick_tm(M, lambda t: wide_footprint(t) <= budget)

    if tm_wide is not None:
        tm = tm_wide
        Mp = _round_up(M, tm)
        x1p = x1 if Mp == M else jnp.pad(x1, ((0, Mp - M), (0, 0)))
        foot = wide_footprint(tm)
        vmem_limit = int(min(budget, max(2 * foot, 16 * _MIB)))
        kernel = functools.partial(
            _mm_cat_wide_kernel, n=N, lane_aligned=lane_aligned)
        out = pl.pallas_call(
            kernel,
            out_shape=jax.ShapeDtypeStruct((Mp, 4 * N), out_dtype),
            grid_spec=pltpu.PrefetchScalarGridSpec(
                num_scalar_prefetch=0,
                grid=(Mp // tm,),
                in_specs=[
                    pl.BlockSpec((tm, K), lambda i: (i, 0)),
                    pl.BlockSpec((K, N), lambda i: (0, 0)),
                ],
                out_specs=pl.BlockSpec((tm, 4 * N), lambda i: (i, 0)),
            ),
            compiler_params=pltpu.CompilerParams(
                # TODO(synk): on v7x, verify the row axis is sharded across the
                # 2 TensorCores; if not, switch to pltpu.CORE_PARALLEL here.
                dimension_semantics=("parallel",),
                vmem_limit_bytes=vmem_limit,
            ),
        )(x1p, x2)
        return out if Mp == M else out[:M]

    # -------- copy-axis tiled path (aligned N too wide for one slab) ---------
    assert lane_aligned, (
        "copy-axis path requires N % 128 == 0; unaligned N of this size is "
        "not supported")
    # TODO(synk): add a K-reduction grid axis + f32 accumulator for very large K.

    def copy_footprint(tm, tn):
        return (2 * tm * K * ds1            # x1 block
                + 2 * K * tn * ds2          # x2 block
                + 3 * tm * tn * dso         # out block (Buffered(3))
                + tm * tn * dso)            # cached P scratch

    tm = tn = None
    for tn_c in (512, 256, 128):
        if N % tn_c != 0:
            continue
        tm_c = _pick_tm(M, lambda t: copy_footprint(t, tn_c) <= budget)
        if tm_c is not None:
            tm, tn = tm_c, tn_c
            break
    if tm is None:
        tm, tn = 8, 128  # last resort for extreme K (see TODO above)

    Mp = _round_up(M, tm)
    x1p = x1 if Mp == M else jnp.pad(x1, ((0, Mp - M), (0, 0)))
    nj = N // tn
    foot = copy_footprint(tm, tn)
    vmem_limit = int(min(budget, max(2 * foot, 16 * _MIB)))

    out_map = lambda i, j, c: (i, c * nj + j)
    try:
        # 3-deep output buffering keeps >=2 store DMAs in flight across the
        # three compute-light re-store steps.
        out_spec = pl.BlockSpec((tm, tn), out_map, pipeline_mode=pl.Buffered(3))
    except TypeError:
        out_spec = pl.BlockSpec((tm, tn), out_map)

    out = pl.pallas_call(
        _mm_cat_copy_axis_kernel,
        out_shape=jax.ShapeDtypeStruct((Mp, 4 * N), out_dtype),
        grid_spec=pltpu.PrefetchScalarGridSpec(
            num_scalar_prefetch=0,
            grid=(Mp // tm, nj, 4),
            in_specs=[
                pl.BlockSpec((tm, K), lambda i, j, c: (i, 0)),
                pl.BlockSpec((K, tn), lambda i, j, c: (0, j)),
            ],
            out_specs=out_spec,
            scratch_shapes=[pltpu.VMEM((tm, tn), out_dtype)],
        ),
        compiler_params=pltpu.CompilerParams(
            # NOTE: the copy axis must stay 'arbitrary' (sequential) — the
            # cached-P-scratch scheme depends on it.
            dimension_semantics=("parallel", "parallel", "arbitrary"),
            vmem_limit_bytes=vmem_limit,
        ),
    )(x1p, x2)
    return out if Mp == M else out[:M]


def reference(a, b):
    p = jnp.dot(a, b)
    v1 = jnp.concatenate([p, p], axis=1)
    return jnp.concatenate([p, v1, p], axis=1)


if __name__ == "__main__":
    key = jax.random.PRNGKey(0)
    k1, k2, k3, k4, k5, k6 = jax.random.split(key, 6)

    # 1) Lane-aligned N -> wide-output path with unmasked slice stores.
    M, K, N = 8, 32, 128
    x1 = jax.random.normal(k1, (M, K), dtype=jnp.float32)
    x2 = jax.random.normal(k2, (K, N), dtype=jnp.float32)
    out = mm_cat(x1, x2)
    jax.block_until_ready(out)
    assert out.shape == (M, 4 * N)
    assert jnp.allclose(out, reference(x1, x2), atol=1e-5, rtol=1e-5)

    # 2) Tiny unaligned N -> wide-output path, in-register concat, one store.
    M2, K2, N2 = 8, 32, 16
    y1 = jax.random.normal(k3, (M2, K2), dtype=jnp.float32)
    y2 = jax.random.normal(k4, (K2, N2), dtype=jnp.float32)
    out2 = mm_cat(y1, y2)
    jax.block_until_ready(out2)
    assert out2.shape == (M2, 4 * N2)
    assert jnp.allclose(out2, reference(y1, y2), atol=1e-5, rtol=1e-5)

    # 3) Exercise the copy-axis fallback (used when the (tm, 4N) slab would
    #    not fit VMEM) at a small shape via force_path.
    M3, K3, N3 = 16, 32, 256
    z1 = jax.random.normal(k5, (M3, K3), dtype=jnp.float32)
    z2 = jax.random.normal(k6, (K3, N3), dtype=jnp.float32)
    out3 = mm_cat(z1, z2, force_path="copy")
    jax.block_until_ready(out3)
    assert out3.shape == (M3, 4 * N3)
    assert jnp.allclose(out3, reference(z1, z2), atol=1e-5, rtol=1e-5)

    print("KERNEL_OK")
</pallas_src>

<mosaic_0001>
module attributes {stable_mosaic.version = 11 : i64} {
  func.func @_mm_cat_wide_kernel(%arg0: i32, %arg1: memref<8x32xf32, #tpu.memory_space<vmem>>, %arg2: memref<32x128xf32, #tpu.memory_space<vmem>>, %arg3: memref<8x512xf32, #tpu.memory_space<vmem>>) attributes {dimension_semantics = [#tpu.dimension_semantics<parallel>], iteration_bounds = array<i64: 1>, scalar_prefetch = 0 : i64, scratch_operands = 0 : i64, tpu.core_type = #tpu.core_type<tc>, window_params = [{transform_indices = @transform_0, window_bounds = array<i64: 8, 32>}, {pipeline_mode = #tpu.pipeline_mode<synchronous>, transform_indices = @transform_1, window_bounds = array<i64: 32, 128>}, {transform_indices = @transform_2, window_bounds = array<i64: 8, 512>}]} {
    %c0 = arith.constant 0 : index
    %c0_0 = arith.constant 0 : index
    %0 = vector.load %arg1[%c0, %c0_0] : memref<8x32xf32, #tpu.memory_space<vmem>>, vector<8x32xf32>
    %c0_1 = arith.constant 0 : index
    %c0_2 = arith.constant 0 : index
    %1 = vector.load %arg2[%c0_1, %c0_2] : memref<32x128xf32, #tpu.memory_space<vmem>>, vector<32x128xf32>
    %cst = arith.constant dense<0.000000e+00> : vector<8x128xf32>
    %2 = tpu.matmul %0, %1, %cst {dimension_numbers = #tpu.dot_dimension_numbers<[1], [0], [0], [1], [0, 0, 1, 1], [], []>} : vector<8x32xf32>, vector<32x128xf32>, vector<8x128xf32> -> vector<8x128xf32>
    %c0_3 = arith.constant 0 : index
    %c0_4 = arith.constant 0 : index
    %3 = vector.load %arg3[%c0_3, %c0_4] : memref<8x512xf32, #tpu.memory_space<vmem>>, vector<8x128xf32>
    tpu.vector_store %arg3[%c0_3, %c0_4], %2 {strides = array<i32>} : memref<8x512xf32, #tpu.memory_space<vmem>>, vector<8x128xf32>,
    %c0_5 = arith.constant 0 : index
    %c128 = arith.constant 128 : index
    %4 = vector.load %arg3[%c0_5, %c128] : memref<8x512xf32, #tpu.memory_space<vmem>>, vector<8x128xf32>
    tpu.vector_store %arg3[%c0_5, %c128], %2 {strides = array<i32>} : memref<8x512xf32, #tpu.memory_space<vmem>>, vector<8x128xf32>,
    %c0_6 = arith.constant 0 : index
    %c256 = arith.constant 256 : index
    %5 = vector.load %arg3[%c0_6, %c256] : memref<8x512xf32, #tpu.memory_space<vmem>>, vector<8x128xf32>
    tpu.vector_store %arg3[%c0_6, %c256], %2 {strides = array<i32>} : memref<8x512xf32, #tpu.memory_space<vmem>>, vector<8x128xf32>,
    %c0_7 = arith.constant 0 : index
    %c384 = arith.constant 384 : index
    %6 = vector.load %arg3[%c0_7, %c384] : memref<8x512xf32, #tpu.memory_space<vmem>>, vector<8x128xf32>
    tpu.vector_store %arg3[%c0_7, %c384], %2 {strides = array<i32>} : memref<8x512xf32, #tpu.memory_space<vmem>>, vector<8x128xf32>,
    return
  }
  func.func @transform_0(%arg0: i32) -> (i32, i32) {
    %c0_i32 = arith.constant 0 : i32
    %c0_i32_0 = arith.constant 0 : i32
    return %arg0, %c0_i32 : i32, i32
  }
  func.func @transform_1(%arg0: i32) -> (i32, i32) {
    %c0_i32 = arith.constant 0 : i32
    %c0_i32_0 = arith.constant 0 : i32
    %c0_i32_1 = arith.constant 0 : i32
    return %c0_i32, %c0_i32_0 : i32, i32
  }
  func.func @transform_2(%arg0: i32) -> (i32, i32) {
    %c0_i32 = arith.constant 0 : i32
    %c0_i32_0 = arith.constant 0 : i32
    return %arg0, %c0_i32 : i32, i32
  }
}

</mosaic_0001>

<llo_original>
// kernel: tpu_custom_call.1
$region0: #{tpu_custom_call.1}
  #allocation0 [shape = 'u32[]', space=smem, size = 0x4, offset = 0x4, fixed_abs, tag = 'smem constant byte address 0x4 - core index']
  #allocation1 [shape = 'u32[72,128]{1,0:T(1,128)}', space=vmem, size = 0x9000, scoped, tag = 'internal scratch']
  %s0 = inlined_call_operand.hbm [shape: f32[8,32], index: 0, kind: input, shape index: {}]
  %s1 = inlined_call_operand.hbm [shape: f32[32,128], index: 1, kind: input, shape index: {}]
  %s2 = inlined_call_operand.hbm [shape: f32[8,512], index: 2, kind: output, shape index: {}]
  %s3 = sld [smem:[#allocation0]]
  $region26: #{tpu_custom_call.1} parent=0
    _
  %s5 = ssub.s32 1, %s3
  %s6 = scalar_select 0, %s5, %s3
  $region1: #{tpu_custom_call.1} parent=0
    #allocation2 [shape = 'u8[4096]{0}', space=vmem, size = 0x1000, scoped, tag = 'input window, operand 0, single buffered']
    #allocation3 [shape = 's32[1]{0}', space=sflag, size = 0x4, scoped, tag = 'scoped memory for tpu_custom_call.1']
    #allocation4 [shape = 's32[1]{0}', space=sflag, size = 0x4, scoped, tag = 'scoped memory for tpu_custom_call.1']
    #allocation5 [shape = 'u8[16384]{0}', space=vmem, size = 0x4000, scoped, tag = 'input window, operand 1, single buffered']
    #allocation6 [shape = 's32[1]{0}', space=sflag, size = 0x4, scoped, tag = 'scoped memory for tpu_custom_call.1']
    #allocation7 [shape = 'u8[16384]{0}', space=vmem, size = 0x4000, scoped, tag = 'output window, operand 0, single buffered']
    %7 = vsyncpa [#allocation3], 0
    %8 = vsyncpa [#allocation6], 0
    %9 = vsyncpa [#allocation4], 0
    // Predicated region
    $region2: #{tpu_custom_call.1} parent=1 // pred_check
      _
    $region3: #{tpu_custom_call.1} parent=1 // pred_check_branch
      %11 = sbr.rel (0) target = $region5
    $region4: #{tpu_custom_call.1} parent=1 // pred_region
      %13 = vsyncadd [#allocation3], 0
      %s15 = sshll.u32 %s0, 4
      %s16 = int_to_ptr.hbm [resolvable:$true] %s15
      %s17 = sshll.u32 [#allocation2], 4
      %s18 = int_to_ptr.vmem [resolvable:$true] %s17
      %20 = dma.hbm_to_vmem [thread:$0]  %s16, 128, %s18, [#allocation3]
    $region5: #{tpu_custom_call.1} parent=1 // pred_fallthru
      _
    // Predicated region
    $region6: #{tpu_custom_call.1} parent=1 // pred_check
      _
    $region7: #{tpu_custom_call.1} parent=1 // pred_check_branch
      %22 = sbr.rel (0) target = $region9
    $region8: #{tpu_custom_call.1} parent=1 // pred_region
      %24 = vsyncadd [#allocation6], 0
      %s25 = sshll.u32 %s1, 4
      %s26 = int_to_ptr.hbm [resolvable:$true] %s25
      %s27 = sshll.u32 [#allocation5], 4
      %s28 = int_to_ptr.vmem [resolvable:$true] %s27
      %33 = dma.hbm_to_vmem [thread:$0]  %s26, 512, %s28, [#allocation6], 128, 128, 8
    $region9: #{tpu_custom_call.1} parent=1 // pred_fallthru
      _
    // Predicated region
    $region10: #{tpu_custom_call.1} parent=1 // pred_check
      _
    $region11: #{tpu_custom_call.1} parent=1 // pred_check_branch
      %35 = sbr.rel (0) target = $region13
    $region12: #{tpu_custom_call.1} parent=1 // pred_region
      %37 = dma.done [#allocation3], 128
    $region13: #{tpu_custom_call.1} parent=1 // pred_fallthru
      _
    // Predicated region
    $region14: #{tpu_custom_call.1} parent=1 // pred_check
      _
    $region15: #{tpu_custom_call.1} parent=1 // pred_check_branch
      %39 = sbr.rel (0) target = $region17
    $region16: #{tpu_custom_call.1} parent=1 // pred_region
      %41 = dma.done [#allocation6], 512
    $region17: #{tpu_custom_call.1} parent=1 // pred_fallthru
      _
    %v42 = vld [vmem:[#allocation2] sm:$0xff]
    %v43 = vld [vmem:[#allocation5] sm:$0xff]
    %v44 = vld [vmem:[#allocation5 + $0x8] sm:$0xff]
    %v45 = vld [vmem:[#allocation5 + $0x10] sm:$0xff]
    %v46 = vld [vmem:[#allocation5 + $0x18] sm:$0xff]
    %vm47 = vcmask 261120
    %v49 = vsel %vm47, %v42, 0
    %51 = vmatpush.msra.mxu0 0.0
    %52 = vmatpush.msra.mxu0 0.0
    %53 = vmatpush.msra.mxu0 0.0
    %54 = vmatpush.msra.mxu0 0.0
    %55 = vmatpush.msra.mxu0 0.0
    %56 = vmatpush.msra.mxu0 0.0
    %57 = vmatpush.msra.mxu0 0.0
    %58 = vmatpush.msra.mxu0 0.0
    %59 = vmatpush.msra.mxu0 0.0
    %60 = vmatpush.msra.mxu0 0.0
    %61 = vmatpush.msra.mxu0 0.0
    %62 = vmatpush.msra.mxu0 0.0
    %63 = vmatpush.msra.mxu0 %v46
    %64 = vmatpush.msra.mxu0 %v45
    %65 = vmatpush.msra.mxu0 %v44
    %66 = vmatpush.msra.mxu0 %v43
    %67 = vmatmul.f32.gmra.mxu0 %v49
    %v68 = vpop.f32.mrf.mxu0
    %v69 = vadd.f32 0.0, %v68
    %70 = vdwg.mxu0
    %71 = vst [vmem:[#allocation7] sm:$0xff] %v69
    %72 = vst [vmem:[#allocation7 + $0x8] sm:$0xff] %v69
    %73 = vst [vmem:[#allocation7 + $0x10] sm:$0xff] %v69
    %74 = vst [vmem:[#allocation7 + $0x18] sm:$0xff] %v69
    // Predicated region
    $region18: #{tpu_custom_call.1} parent=1 // pred_check
      _
    $region19: #{tpu_custom_call.1} parent=1 // pred_check_branch
      %76 = sbr.rel (0) target = $region21
    $region20: #{tpu_custom_call.1} parent=1 // pred_region
      %78 = vsyncadd [#allocation4], 0
      %s80 = sshll.u32 [#allocation7], 4
      %s81 = int_to_ptr.vmem [resolvable:$true] %s80
      %s82 = sshll.u32 %s2, 4
      %s83 = int_to_ptr.hbm [resolvable:$true] %s82
      %85 = dma.vmem_to_hbm [thread:$0]  %s81, 512, %s83, [#allocation4]
    $region21: #{tpu_custom_call.1} parent=1 // pred_fallthru
      _
    // Predicated region
    $region22: #{tpu_custom_call.1} parent=1 // pred_check
      _
    $region23: #{tpu_custom_call.1} parent=1 // pred_check_branch
      %87 = sbr.rel (0) target = $region25
    $region24: #{tpu_custom_call.1} parent=1 // pred_region
      %89 = dma.done [#allocation4], 512
    $region25: #{tpu_custom_call.1} parent=1 // pred_fallthru
      _
    %90 = vsyncpa [#allocation3], 1
    %91 = vsyncpa [#allocation6], 1
    %92 = vsyncpa [#allocation4], 1

</llo_original>
